<compile_context>
chip_gen: v7x
topology: tpu7x:2x2x1
jax: 0.10.0
libtpu: 0.0.40
codegen_flags: <defaults>
</compile_context>

<pallas_src>
import math
import numpy as np
import jax
import jax.numpy as jnp
from jax import lax
from jax.experimental import pallas as pl
from jax.experimental.pallas import tpu as pltpu

D_MODEL = 32
NHEAD = 4
HEAD_DIM = D_MODEL // NHEAD
DIM_FF = 64
SEQ = 8
BATCH = 2
LN_EPS = 1e-5
M_ROWS = SEQ * BATCH          # rows of the (L*N, E) slab, l-major: row = l*N + n

assert HEAD_DIM & (HEAD_DIM - 1) == 0
assert SEQ & (SEQ - 1) == 0
assert BATCH & (BATCH - 1) == 0
assert M_ROWS & (M_ROWS - 1) == 0 and M_ROWS % BATCH == 0
LOG2_DH = int(math.log2(HEAD_DIM))
LOG2_L = int(math.log2(SEQ))
LOG2_N = int(math.log2(BATCH))


# ----------------------------- Fused Pallas kernel -----------------------------

def _layer_norm(z, g, b):
    mu = jnp.mean(z, axis=-1, keepdims=True)
    d = z - mu
    var = jnp.mean(d * d, axis=-1, keepdims=True)
    return d * lax.rsqrt(var + LN_EPS) * g + b


def encoder_layer_kernel(x_ref, pos_ref, w_in_ref, w_big_ref, vecs_ref,
                         out_ref, attn_ref):
    E, F, H, L, N, M = D_MODEL, DIM_FF, NHEAD, SEQ, BATCH, M_ROWS

    x = x_ref[...]                         # (M, E), l-major rows (row = l*N + n)
    pos = pos_ref[...]
    vecs = vecs_ref[...]                   # (8, 3E) packed bias / LN vectors

    b_in = vecs[0:1, :]                    # (1, 3E)  [bq*scale | bk | bv]
    b_o  = vecs[1:2, 0:E]
    g1   = vecs[2:3, 0:E]
    be1  = vecs[3:4, 0:E]
    b_1  = vecs[4:5, 0:F]
    b_2  = vecs[5:6, 0:E]
    g2   = vecs[6:7, 0:E]
    be2  = vecs[7:8, 0:E]

    # ---- fused Q/K/V projection: one MXU pass --------------------------------
    qk_in = x + pos                                        # with_pos_embed (q, k only)
    lhs = jnp.concatenate([qk_in, x], axis=0)              # (2M, E)
    proj = jnp.dot(lhs, w_in_ref[...],
                   preferred_element_type=jnp.float32) + b_in   # (2M, 3E)
    q = proj[0:M, 0:E]                     # already scaled by 1/sqrt(Dh) (folded)
    k = proj[0:M, E:2 * E]
    v = proj[M:2 * M, 2 * E:3 * E]

    # ---- all-head, all-batch attention in one pass ----------------------------
    # column-ownership: which head owns feature column e
    col_head = lax.broadcasted_iota(jnp.int32, (M, E), 1) >> LOG2_DH   # (M, E)
    # head-stacked, head-masked queries: row h*M + i carries head h of query row i
    q_sel = jnp.concatenate(
        [jnp.where(col_head == h, q, 0.0) for h in range(H)], axis=0)  # (H*M, E)

    # scores for every (head, query row) against every key row: (H*M, M)
    s = lax.dot_general(q_sel, k, (((1,), (1,)), ((), ())),
                        preferred_element_type=jnp.float32)
    # mask cross-batch pairs (rows are l-major interleaved: batch = index & (N-1))
    r_par = lax.broadcasted_iota(jnp.int32, (H * M, M), 0) & (N - 1)
    c_par = lax.broadcasted_iota(jnp.int32, (H * M, M), 1) & (N - 1)
    s = jnp.where(r_par == c_par, s, -1e30)

    # ONE softmax pass over all H*M rows (exact division for f32 parity)
    s = s - jnp.max(s, axis=-1, keepdims=True)
    ex = jnp.exp(s)
    p = ex / jnp.sum(ex, axis=-1, keepdims=True)           # (H*M, M)

    # P @ V for all heads at once; merge heads with the column-ownership mask
    o_stack = jnp.dot(p, v, preferred_element_type=jnp.float32)        # (H*M, E)
    o = jnp.where(col_head == 0, o_stack[0:M, :], 0.0)
    for h in range(1, H):
        o = o + jnp.where(col_head == h, o_stack[h * M:(h + 1) * M, :], 0.0)

    # head-averaged attention weights, emitted as ONE dense (N*L, L) store.
    #   perm_sum : (M, H*M)  sums head blocks and reorders rows l-major -> batch-major
    #   col_sum  : (M, L)    sums the (same-batch, cross-batch) column pair and /H
    a_idx = lax.broadcasted_iota(jnp.int32, (M, H * M), 0)     # a = n*L + l
    r_idx = lax.broadcasted_iota(jnp.int32, (M, H * M), 1)
    tgt = (a_idx & (L - 1)) * N + (a_idx >> LOG2_L)            # l*N + n
    perm_sum = ((r_idx & (M - 1)) == tgt).astype(jnp.float32)
    j_idx = lax.broadcasted_iota(jnp.int32, (M, L), 0)
    m_idx = lax.broadcasted_iota(jnp.int32, (M, L), 1)
    col_sum = jnp.where((j_idx >> LOG2_N) == m_idx, 1.0 / H, 0.0)
    attn_ref[...] = jnp.dot(
        jnp.dot(perm_sum, p, preferred_element_type=jnp.float32),
        col_sum, preferred_element_type=jnp.float32).astype(attn_ref.dtype)

    # ---- output projection + residual + LayerNorm1 ----------------------------
    wo = w_big_ref[0:E, 0:E]                                   # (E, E)
    attn_out = jnp.dot(o, wo, preferred_element_type=jnp.float32) + b_o
    src1 = _layer_norm(x + attn_out, g1, be1)                  # dropout1 = identity

    # ---- FFN + residual + LayerNorm2 ------------------------------------------
    w1 = w_big_ref[E:2 * E, :]                                 # (E, F)
    w2 = w_big_ref[2 * E:2 * E + F, 0:E]                       # (F, E)
    h1 = jnp.maximum(
        jnp.dot(src1, w1, preferred_element_type=jnp.float32) + b_1, 0.0)
    y = jnp.dot(h1, w2, preferred_element_type=jnp.float32) + b_2
    out_ref[...] = _layer_norm(src1 + y, g2, be2).astype(out_ref.dtype)


def _fused_encoder_layer(x2d, pos2d, pp):
    M, E = x2d.shape
    vmem = pl.BlockSpec(memory_space=pltpu.MemorySpace.VMEM)
    return pl.pallas_call(
        encoder_layer_kernel,
        out_shape=(jax.ShapeDtypeStruct((M, E), x2d.dtype),
                   jax.ShapeDtypeStruct((M, SEQ), jnp.float32)),
        in_specs=[vmem] * 5,
        out_specs=(vmem, vmem),
    )(x2d, pos2d, pp['w_in'], pp['w_big'], pp['vecs'])


# ----------------------------- Parameter prep (once) -----------------------------

def prepare_params(p):
    """Pre-transpose / pre-scale / pack torch-layout weights once (hoisted)."""
    E, F = D_MODEL, DIM_FF
    scale = 1.0 / (HEAD_DIM ** 0.5)
    Wq = p['in_proj_w'][:E] * scale          # fold 1/sqrt(Dh) into Q projection
    Wk = p['in_proj_w'][E:2 * E]
    Wv = p['in_proj_w'][2 * E:]
    bq = p['in_proj_b'][:E] * scale
    bk = p['in_proj_b'][E:2 * E]
    bv = p['in_proj_b'][2 * E:]

    w_in = jnp.concatenate([Wq.T, Wk.T, Wv.T], axis=1)          # (E, 3E)

    pad_cols = lambda a, w: jnp.pad(a, ((0, 0), (0, w - a.shape[1])))
    w_big = jnp.concatenate([pad_cols(p['out_proj_w'].T, F),    # rows 0:E    Wo^T
                             p['w1'].T,                         # rows E:2E   W1^T
                             pad_cols(p['w2'].T, F)], axis=0)   # rows 2E:2E+F W2^T

    def vec_row(vec, w=3 * E):
        return jnp.pad(vec.reshape(1, -1), ((0, 0), (0, w - vec.shape[0])))

    vecs = jnp.concatenate([
        vec_row(jnp.concatenate([bq, bk, bv])),                 # row 0: b_in (3E)
        vec_row(p['out_proj_b']),                               # row 1: bo
        vec_row(p['ln1_g']), vec_row(p['ln1_b']),               # rows 2,3
        vec_row(p['b1']), vec_row(p['b2']),                     # rows 4,5
        vec_row(p['ln2_g']), vec_row(p['ln2_b'])], axis=0)      # rows 6,7

    return {'w_in': w_in, 'w_big': w_big, 'vecs': vecs}


# ----------------------------- Forward wrapper -----------------------------

def transformer_encoder_layer_forward(src, pos, prepared):
    """forward_post semantics. src, pos: (L, N, E). Returns (out (L,N,E), attn (N,L,L)).
    Only free reshapes here (no transposes): the kernel works in l-major row order
    and emits the attention weights already in batch-major (N*L, L) layout."""
    L, N, E = src.shape
    out2d, attn2d = _fused_encoder_layer(src.reshape(L * N, E),
                                         pos.reshape(L * N, E), prepared)
    return out2d.reshape(L, N, E), attn2d.reshape(N, L, L)


# ----------------------------- Reference (pure JAX) -----------------------------

def reference_forward(src, pos, p):
    L, N, E = src.shape
    H, Dh = NHEAD, HEAD_DIM
    lin = lambda x, w, b: x @ w.T + b
    Wq, Wk, Wv = jnp.split(p['in_proj_w'], 3, axis=0)
    bq, bk, bv = jnp.split(p['in_proj_b'], 3)
    qk = src + pos
    q = lin(qk, Wq, bq)
    k = lin(qk, Wk, bk)
    v = lin(src, Wv, bv)
    heads = lambda t: t.reshape(L, N, H, Dh).transpose(1, 2, 0, 3)  # (N,H,L,Dh)
    qh, kh, vh = heads(q), heads(k), heads(v)
    s = jnp.einsum('nhld,nhmd->nhlm', qh, kh) / (Dh ** 0.5)
    pw = jax.nn.softmax(s, axis=-1)
    o = jnp.einsum('nhlm,nhmd->nhld', pw, vh).transpose(2, 0, 1, 3).reshape(L, N, E)
    attn_out = lin(o, p['out_proj_w'], p['out_proj_b'])

    def ln(x, g, b):
        mu = x.mean(-1, keepdims=True)
        var = ((x - mu) ** 2).mean(-1, keepdims=True)
        return (x - mu) / jnp.sqrt(var + LN_EPS) * g + b

    x = ln(src + attn_out, p['ln1_g'], p['ln1_b'])
    y = lin(jax.nn.relu(lin(x, p['w1'], p['b1'])), p['w2'], p['b2'])
    x = ln(x + y, p['ln2_g'], p['ln2_b'])
    return x, pw.mean(axis=1)


# ----------------------------- Main -----------------------------

if __name__ == "__main__":
    key = jax.random.PRNGKey(0)
    ks = jax.random.split(key, 12)
    E, F = D_MODEL, DIM_FF

    params = {
        'in_proj_w':  0.05 * jax.random.normal(ks[0], (3 * E, E), jnp.float32),
        'in_proj_b':  0.01 * jax.random.normal(ks[1], (3 * E,), jnp.float32),
        'out_proj_w': 0.05 * jax.random.normal(ks[2], (E, E), jnp.float32),
        'out_proj_b': 0.01 * jax.random.normal(ks[3], (E,), jnp.float32),
        'ln1_g': jnp.ones((E,), jnp.float32),
        'ln1_b': jnp.zeros((E,), jnp.float32),
        'w1': 0.05 * jax.random.normal(ks[4], (F, E), jnp.float32),
        'b1': 0.01 * jax.random.normal(ks[5], (F,), jnp.float32),
        'w2': 0.05 * jax.random.normal(ks[6], (E, F), jnp.float32),
        'b2': 0.01 * jax.random.normal(ks[7], (E,), jnp.float32),
        'ln2_g': jnp.ones((E,), jnp.float32),
        'ln2_b': jnp.zeros((E,), jnp.float32),
    }

    src = jax.random.normal(ks[8], (SEQ, BATCH, E), jnp.float32)
    pos = 0.1 * jax.random.normal(ks[9], (SEQ, BATCH, E), jnp.float32)

    prepared = prepare_params(params)          # one-time weight prep (hoisted)
    fwd = jax.jit(transformer_encoder_layer_forward)

    out, attn = fwd(src, pos, prepared)
    out = jax.block_until_ready(out)
    attn = jax.block_until_ready(attn)

    ref_out, ref_attn = reference_forward(src, pos, params)
    np.testing.assert_allclose(np.asarray(out), np.asarray(ref_out), rtol=1e-4, atol=1e-4)
    np.testing.assert_allclose(np.asarray(attn), np.asarray(ref_attn), rtol=1e-4, atol=1e-4)

    print("KERNEL_OK")
</pallas_src>

<mosaic_0001>
module attributes {stable_mosaic.version = 11 : i64} {
  func.func @encoder_layer_kernel(%arg0: memref<16x32xf32, #tpu.memory_space<vmem>>, %arg1: memref<16x32xf32, #tpu.memory_space<vmem>>, %arg2: memref<32x96xf32, #tpu.memory_space<vmem>>, %arg3: memref<128x64xf32, #tpu.memory_space<vmem>>, %arg4: memref<8x96xf32, #tpu.memory_space<vmem>>, %arg5: memref<16x32xf32, #tpu.memory_space<vmem>>, %arg6: memref<16x8xf32, #tpu.memory_space<vmem>>) attributes {dimension_semantics = [], scalar_prefetch = 0 : i64, scratch_operands = 0 : i64, tpu.core_type = #tpu.core_type<tc>} {
    %c0 = arith.constant 0 : index
    %c0_0 = arith.constant 0 : index
    %0 = vector.load %arg0[%c0, %c0_0] : memref<16x32xf32, #tpu.memory_space<vmem>>, vector<16x32xf32>
    %c0_1 = arith.constant 0 : index
    %c0_2 = arith.constant 0 : index
    %1 = vector.load %arg1[%c0_1, %c0_2] : memref<16x32xf32, #tpu.memory_space<vmem>>, vector<16x32xf32>
    %c0_3 = arith.constant 0 : index
    %c0_4 = arith.constant 0 : index
    %2 = vector.load %arg4[%c0_3, %c0_4] : memref<8x96xf32, #tpu.memory_space<vmem>>, vector<8x96xf32>
    %3 = vector.extract_strided_slice %2 {offsets = [0, 0], sizes = [1, 96], strides = [1, 1]} : vector<8x96xf32> to vector<1x96xf32>
    %4 = vector.extract_strided_slice %2 {offsets = [1, 0], sizes = [1, 32], strides = [1, 1]} : vector<8x96xf32> to vector<1x32xf32>
    %5 = vector.extract_strided_slice %2 {offsets = [2, 0], sizes = [1, 32], strides = [1, 1]} : vector<8x96xf32> to vector<1x32xf32>
    %6 = vector.extract_strided_slice %2 {offsets = [3, 0], sizes = [1, 32], strides = [1, 1]} : vector<8x96xf32> to vector<1x32xf32>
    %7 = vector.extract_strided_slice %2 {offsets = [4, 0], sizes = [1, 64], strides = [1, 1]} : vector<8x96xf32> to vector<1x64xf32>
    %8 = vector.extract_strided_slice %2 {offsets = [5, 0], sizes = [1, 32], strides = [1, 1]} : vector<8x96xf32> to vector<1x32xf32>
    %9 = vector.extract_strided_slice %2 {offsets = [6, 0], sizes = [1, 32], strides = [1, 1]} : vector<8x96xf32> to vector<1x32xf32>
    %10 = vector.extract_strided_slice %2 {offsets = [7, 0], sizes = [1, 32], strides = [1, 1]} : vector<8x96xf32> to vector<1x32xf32>
    %11 = arith.addf %0, %1 : vector<16x32xf32>
    %12 = tpu.concatenate %11, %0 in 0 : vector<16x32xf32>, vector<16x32xf32> -> vector<32x32xf32>
    %c0_5 = arith.constant 0 : index
    %c0_6 = arith.constant 0 : index
    %13 = vector.load %arg2[%c0_5, %c0_6] : memref<32x96xf32, #tpu.memory_space<vmem>>, vector<32x96xf32>
    %cst = arith.constant dense<0.000000e+00> : vector<32x96xf32>
    %14 = tpu.matmul %12, %13, %cst {dimension_numbers = #tpu.dot_dimension_numbers<[1], [0], [0], [1], [0, 0, 1, 1], [], []>} : vector<32x32xf32>, vector<32x96xf32>, vector<32x96xf32> -> vector<32x96xf32>
    %15 = vector.broadcast %3 : vector<1x96xf32> to vector<32x96xf32>
    %16 = arith.addf %14, %15 : vector<32x96xf32>
    %17 = vector.extract_strided_slice %16 {offsets = [0, 0], sizes = [16, 32], strides = [1, 1]} : vector<32x96xf32> to vector<16x32xf32>
    %18 = vector.extract_strided_slice %16 {offsets = [0, 32], sizes = [16, 32], strides = [1, 1]} : vector<32x96xf32> to vector<16x32xf32>
    %19 = vector.extract_strided_slice %16 {offsets = [16, 64], sizes = [16, 32], strides = [1, 1]} : vector<32x96xf32> to vector<16x32xf32>
    %20 = tpu.iota {dimensions = array<i32: 1>} : vector<16x32xi32>
    %c3_i32 = arith.constant 3 : i32
    %21 = vector.broadcast %c3_i32 : i32 to vector<16x32xi32>
    %22 = arith.shrsi %20, %21 : vector<16x32xi32>
    %c0_i32 = arith.constant 0 : i32
    %23 = vector.broadcast %c0_i32 : i32 to vector<16x32xi32>
    %24 = arith.cmpi eq, %22, %23 : vector<16x32xi32>
    %cst_7 = arith.constant 0.000000e+00 : f32
    %25 = vector.broadcast %cst_7 : f32 to vector<16x32xf32>
    %26 = arith.select %24, %17, %25 : vector<16x32xi1>, vector<16x32xf32>
    %c1_i32 = arith.constant 1 : i32
    %27 = vector.broadcast %c1_i32 : i32 to vector<16x32xi32>
    %28 = arith.cmpi eq, %22, %27 : vector<16x32xi32>
    %cst_8 = arith.constant 0.000000e+00 : f32
    %29 = vector.broadcast %cst_8 : f32 to vector<16x32xf32>
    %30 = arith.select %28, %17, %29 : vector<16x32xi1>, vector<16x32xf32>
    %c2_i32 = arith.constant 2 : i32
    %31 = vector.broadcast %c2_i32 : i32 to vector<16x32xi32>
    %32 = arith.cmpi eq, %22, %31 : vector<16x32xi32>
    %cst_9 = arith.constant 0.000000e+00 : f32
    %33 = vector.broadcast %cst_9 : f32 to vector<16x32xf32>
    %34 = arith.select %32, %17, %33 : vector<16x32xi1>, vector<16x32xf32>
    %c3_i32_10 = arith.constant 3 : i32
    %35 = vector.broadcast %c3_i32_10 : i32 to vector<16x32xi32>
    %36 = arith.cmpi eq, %22, %35 : vector<16x32xi32>
    %cst_11 = arith.constant 0.000000e+00 : f32
    %37 = vector.broadcast %cst_11 : f32 to vector<16x32xf32>
    %38 = arith.select %36, %17, %37 : vector<16x32xi1>, vector<16x32xf32>
    %39 = tpu.concatenate %26, %30, %34, %38 in 0 : vector<16x32xf32>, vector<16x32xf32>, vector<16x32xf32>, vector<16x32xf32> -> vector<64x32xf32>
    %cst_12 = arith.constant dense<0.000000e+00> : vector<64x16xf32>
    %40 = tpu.matmul %39, %18, %cst_12 {dimension_numbers = #tpu.dot_dimension_numbers<[1], [1], [0], [0], [0, 0, 1, 0], [], []>} : vector<64x32xf32>, vector<16x32xf32>, vector<64x16xf32> -> vector<64x16xf32>
    %41 = tpu.iota {dimensions = array<i32: 0>} : vector<64x16xi32>
    %c1_i32_13 = arith.constant 1 : i32
    %42 = vector.broadcast %c1_i32_13 : i32 to vector<64x16xi32>
    %43 = arith.andi %41, %42 : vector<64x16xi32>
    %44 = tpu.iota {dimensions = array<i32: 1>} : vector<64x16xi32>
    %c1_i32_14 = arith.constant 1 : i32
    %45 = vector.broadcast %c1_i32_14 : i32 to vector<64x16xi32>
    %46 = arith.andi %44, %45 : vector<64x16xi32>
    %47 = arith.cmpi eq, %43, %46 : vector<64x16xi32>
    %cst_15 = arith.constant -1.000000e+30 : f32
    %48 = vector.broadcast %cst_15 : f32 to vector<64x16xf32>
    %49 = arith.select %47, %40, %48 : vector<64x16xi1>, vector<64x16xf32>
    %cst_16 = arith.constant dense<0xFF800000> : vector<64xf32>
    %50 = vector.multi_reduction <maximumf>, %49, %cst_16 [1] : vector<64x16xf32> to vector<64xf32>
    %51 = vector.shape_cast %50 : vector<64xf32> to vector<64x1xf32>
    %52 = vector.broadcast %51 : vector<64x1xf32> to vector<64x16xf32>
    %53 = arith.subf %49, %52 : vector<64x16xf32>
    %54 = math.exp %53 : vector<64x16xf32>
    %cst_17 = arith.constant dense<0.000000e+00> : vector<64xf32>
    %55 = vector.multi_reduction <add>, %54, %cst_17 [1] : vector<64x16xf32> to vector<64xf32>
    %56 = vector.shape_cast %55 : vector<64xf32> to vector<64x1xf32>
    %57 = vector.broadcast %56 : vector<64x1xf32> to vector<64x16xf32>
    %58 = arith.divf %54, %57 : vector<64x16xf32>
    %cst_18 = arith.constant dense<0.000000e+00> : vector<64x32xf32>
    %59 = tpu.matmul %58, %19, %cst_18 {dimension_numbers = #tpu.dot_dimension_numbers<[1], [0], [0], [1], [0, 0, 1, 1], [], []>} : vector<64x16xf32>, vector<16x32xf32>, vector<64x32xf32> -> vector<64x32xf32>
    %c0_i32_19 = arith.constant 0 : i32
    %60 = vector.broadcast %c0_i32_19 : i32 to vector<16x32xi32>
    %61 = arith.cmpi eq, %22, %60 : vector<16x32xi32>
    %62 = vector.extract_strided_slice %59 {offsets = [0, 0], sizes = [16, 32], strides = [1, 1]} : vector<64x32xf32> to vector<16x32xf32>
    %cst_20 = arith.constant 0.000000e+00 : f32
    %63 = vector.broadcast %cst_20 : f32 to vector<16x32xf32>
    %64 = arith.select %61, %62, %63 : vector<16x32xi1>, vector<16x32xf32>
    %c1_i32_21 = arith.constant 1 : i32
    %65 = vector.broadcast %c1_i32_21 : i32 to vector<16x32xi32>
    %66 = arith.cmpi eq, %22, %65 : vector<16x32xi32>
    %67 = vector.extract_strided_slice %59 {offsets = [16, 0], sizes = [16, 32], strides = [1, 1]} : vector<64x32xf32> to vector<16x32xf32>
    %cst_22 = arith.constant 0.000000e+00 : f32
    %68 = vector.broadcast %cst_22 : f32 to vector<16x32xf32>
    %69 = arith.select %66, %67, %68 : vector<16x32xi1>, vector<16x32xf32>
    %70 = arith.addf %64, %69 : vector<16x32xf32>
    %c2_i32_23 = arith.constant 2 : i32
    %71 = vector.broadcast %c2_i32_23 : i32 to vector<16x32xi32>
    %72 = arith.cmpi eq, %22, %71 : vector<16x32xi32>
    %73 = vector.extract_strided_slice %59 {offsets = [32, 0], sizes = [16, 32], strides = [1, 1]} : vector<64x32xf32> to vector<16x32xf32>
    %cst_24 = arith.constant 0.000000e+00 : f32
    %74 = vector.broadcast %cst_24 : f32 to vector<16x32xf32>
    %75 = arith.select %72, %73, %74 : vector<16x32xi1>, vector<16x32xf32>
    %76 = arith.addf %70, %75 : vector<16x32xf32>
    %c3_i32_25 = arith.constant 3 : i32
    %77 = vector.broadcast %c3_i32_25 : i32 to vector<16x32xi32>
    %78 = arith.cmpi eq, %22, %77 : vector<16x32xi32>
    %79 = vector.extract_strided_slice %59 {offsets = [48, 0], sizes = [16, 32], strides = [1, 1]} : vector<64x32xf32> to vector<16x32xf32>
    %cst_26 = arith.constant 0.000000e+00 : f32
    %80 = vector.broadcast %cst_26 : f32 to vector<16x32xf32>
    %81 = arith.select %78, %79, %80 : vector<16x32xi1>, vector<16x32xf32>
    %82 = arith.addf %76, %81 : vector<16x32xf32>
    %83 = tpu.iota {dimensions = array<i32: 0>} : vector<16x64xi32>
    %84 = tpu.iota {dimensions = array<i32: 1>} : vector<16x64xi32>
    %c7_i32 = arith.constant 7 : i32
    %85 = vector.broadcast %c7_i32 : i32 to vector<16x64xi32>
    %86 = arith.andi %83, %85 : vector<16x64xi32>
    %c2_i32_27 = arith.constant 2 : i32
    %87 = vector.broadcast %c2_i32_27 : i32 to vector<16x64xi32>
    %88 = arith.muli %86, %87 : vector<16x64xi32>
    %c3_i32_28 = arith.constant 3 : i32
    %89 = vector.broadcast %c3_i32_28 : i32 to vector<16x64xi32>
    %90 = arith.shrsi %83, %89 : vector<16x64xi32>
    %91 = arith.addi %88, %90 : vector<16x64xi32>
    %c15_i32 = arith.constant 15 : i32
    %92 = vector.broadcast %c15_i32 : i32 to vector<16x64xi32>
    %93 = arith.andi %84, %92 : vector<16x64xi32>
    %94 = arith.cmpi eq, %93, %91 : vector<16x64xi32>
    %95 = arith.extui %94 : vector<16x64xi1> to vector<16x64xi32>
    %96 = arith.sitofp %95 : vector<16x64xi32> to vector<16x64xf32>
    %97 = tpu.iota {dimensions = array<i32: 0>} : vector<16x8xi32>
    %98 = tpu.iota {dimensions = array<i32: 1>} : vector<16x8xi32>
    %c1_i32_29 = arith.constant 1 : i32
    %99 = vector.broadcast %c1_i32_29 : i32 to vector<16x8xi32>
    %100 = arith.shrsi %97, %99 : vector<16x8xi32>
    %101 = arith.cmpi eq, %100, %98 : vector<16x8xi32>
    %cst_30 = arith.constant 2.500000e-01 : f32
    %cst_31 = arith.constant 0.000000e+00 : f32
    %102 = vector.broadcast %cst_30 : f32 to vector<16x8xf32>
    %103 = vector.broadcast %cst_31 : f32 to vector<16x8xf32>
    %104 = arith.select %101, %102, %103 : vector<16x8xi1>, vector<16x8xf32>
    %cst_32 = arith.constant dense<0.000000e+00> : vector<16x16xf32>
    %105 = tpu.matmul %96, %58, %cst_32 {dimension_numbers = #tpu.dot_dimension_numbers<[1], [0], [0], [1], [0, 0, 1, 1], [], []>} : vector<16x64xf32>, vector<64x16xf32>, vector<16x16xf32> -> vector<16x16xf32>
    %cst_33 = arith.constant dense<0.000000e+00> : vector<16x8xf32>
    %106 = tpu.matmul %105, %104, %cst_33 {dimension_numbers = #tpu.dot_dimension_numbers<[1], [0], [0], [1], [0, 0, 1, 1], [], []>} : vector<16x16xf32>, vector<16x8xf32>, vector<16x8xf32> -> vector<16x8xf32>
    %c0_34 = arith.constant 0 : index
    %c0_35 = arith.constant 0 : index
    %107 = vector.load %arg6[%c0_34, %c0_35] : memref<16x8xf32, #tpu.memory_space<vmem>>, vector<16x8xf32>
    tpu.vector_store %arg6[%c0_34, %c0_35], %106 {strides = array<i32>} : memref<16x8xf32, #tpu.memory_space<vmem>>, vector<16x8xf32>,
    %c0_36 = arith.constant 0 : index
    %c0_37 = arith.constant 0 : index
    %108 = vector.load %arg3[%c0_36, %c0_37] : memref<128x64xf32, #tpu.memory_space<vmem>>, vector<32x32xf32>
    %cst_38 = arith.constant dense<0.000000e+00> : vector<16x32xf32>
    %109 = tpu.matmul %82, %108, %cst_38 {dimension_numbers = #tpu.dot_dimension_numbers<[1], [0], [0], [1], [0, 0, 1, 1], [], []>} : vector<16x32xf32>, vector<32x32xf32>, vector<16x32xf32> -> vector<16x32xf32>
    %110 = vector.broadcast %4 : vector<1x32xf32> to vector<16x32xf32>
    %111 = arith.addf %109, %110 : vector<16x32xf32>
    %112 = arith.addf %0, %111 : vector<16x32xf32>
    %cst_39 = arith.constant dense<0.000000e+00> : vector<16xf32>
    %113 = vector.multi_reduction <add>, %112, %cst_39 [1] : vector<16x32xf32> to vector<16xf32>
    %114 = vector.shape_cast %113 : vector<16xf32> to vector<16x1xf32>
    %cst_40 = arith.constant 3.200000e+01 : f32
    %115 = vector.broadcast %cst_40 : f32 to vector<16x1xf32>
    %116 = arith.divf %114, %115 : vector<16x1xf32>
    %117 = vector.broadcast %116 : vector<16x1xf32> to vector<16x32xf32>
    %118 = arith.subf %112, %117 : vector<16x32xf32>
    %119 = arith.mulf %118, %118 : vector<16x32xf32>
    %cst_41 = arith.constant dense<0.000000e+00> : vector<16xf32>
    %120 = vector.multi_reduction <add>, %119, %cst_41 [1] : vector<16x32xf32> to vector<16xf32>
    %121 = vector.shape_cast %120 : vector<16xf32> to vector<16x1xf32>
    %cst_42 = arith.constant 3.200000e+01 : f32
    %122 = vector.broadcast %cst_42 : f32 to vector<16x1xf32>
    %123 = arith.divf %121, %122 : vector<16x1xf32>
    %cst_43 = arith.constant 9.99999974E-6 : f32
    %124 = vector.broadcast %cst_43 : f32 to vector<16x1xf32>
    %125 = arith.addf %123, %124 : vector<16x1xf32>
    %126 = math.rsqrt %125 : vector<16x1xf32>
    %127 = vector.broadcast %126 : vector<16x1xf32> to vector<16x32xf32>
    %128 = arith.mulf %118, %127 : vector<16x32xf32>
    %129 = vector.broadcast %5 : vector<1x32xf32> to vector<16x32xf32>
    %130 = arith.mulf %128, %129 : vector<16x32xf32>
    %131 = vector.broadcast %6 : vector<1x32xf32> to vector<16x32xf32>
    %132 = arith.addf %130, %131 : vector<16x32xf32>
    %c32 = arith.constant 32 : index
    %c0_44 = arith.constant 0 : index
    %133 = vector.load %arg3[%c32, %c0_44] : memref<128x64xf32, #tpu.memory_space<vmem>>, vector<32x64xf32>
    %c64 = arith.constant 64 : index
    %c0_45 = arith.constant 0 : index
    %134 = vector.load %arg3[%c64, %c0_45] : memref<128x64xf32, #tpu.memory_space<vmem>>, vector<64x32xf32>
    %cst_46 = arith.constant dense<0.000000e+00> : vector<16x64xf32>
    %135 = tpu.matmul %132, %133, %cst_46 {dimension_numbers = #tpu.dot_dimension_numbers<[1], [0], [0], [1], [0, 0, 1, 1], [], []>} : vector<16x32xf32>, vector<32x64xf32>, vector<16x64xf32> -> vector<16x64xf32>
    %136 = vector.broadcast %7 : vector<1x64xf32> to vector<16x64xf32>
    %137 = arith.addf %135, %136 : vector<16x64xf32>
    %cst_47 = arith.constant 0.000000e+00 : f32
    %138 = vector.broadcast %cst_47 : f32 to vector<16x64xf32>
    %139 = arith.maximumf %137, %138 : vector<16x64xf32>
    %cst_48 = arith.constant dense<0.000000e+00> : vector<16x32xf32>
    %140 = tpu.matmul %139, %134, %cst_48 {dimension_numbers = #tpu.dot_dimension_numbers<[1], [0], [0], [1], [0, 0, 1, 1], [], []>} : vector<16x64xf32>, vector<64x32xf32>, vector<16x32xf32> -> vector<16x32xf32>
    %141 = vector.broadcast %8 : vector<1x32xf32> to vector<16x32xf32>
    %142 = arith.addf %140, %141 : vector<16x32xf32>
    %143 = arith.addf %132, %142 : vector<16x32xf32>
    %cst_49 = arith.constant dense<0.000000e+00> : vector<16xf32>
    %144 = vector.multi_reduction <add>, %143, %cst_49 [1] : vector<16x32xf32> to vector<16xf32>
    %145 = vector.shape_cast %144 : vector<16xf32> to vector<16x1xf32>
    %cst_50 = arith.constant 3.200000e+01 : f32
    %146 = vector.broadcast %cst_50 : f32 to vector<16x1xf32>
    %147 = arith.divf %145, %146 : vector<16x1xf32>
    %148 = vector.broadcast %147 : vector<16x1xf32> to vector<16x32xf32>
    %149 = arith.subf %143, %148 : vector<16x32xf32>
    %150 = arith.mulf %149, %149 : vector<16x32xf32>
    %cst_51 = arith.constant dense<0.000000e+00> : vector<16xf32>
    %151 = vector.multi_reduction <add>, %150, %cst_51 [1] : vector<16x32xf32> to vector<16xf32>
    %152 = vector.shape_cast %151 : vector<16xf32> to vector<16x1xf32>
    %cst_52 = arith.constant 3.200000e+01 : f32
    %153 = vector.broadcast %cst_52 : f32 to vector<16x1xf32>
    %154 = arith.divf %152, %153 : vector<16x1xf32>
    %cst_53 = arith.constant 9.99999974E-6 : f32
    %155 = vector.broadcast %cst_53 : f32 to vector<16x1xf32>
    %156 = arith.addf %154, %155 : vector<16x1xf32>
    %157 = math.rsqrt %156 : vector<16x1xf32>
    %158 = vector.broadcast %157 : vector<16x1xf32> to vector<16x32xf32>
    %159 = arith.mulf %149, %158 : vector<16x32xf32>
    %160 = vector.broadcast %9 : vector<1x32xf32> to vector<16x32xf32>
    %161 = arith.mulf %159, %160 : vector<16x32xf32>
    %162 = vector.broadcast %10 : vector<1x32xf32> to vector<16x32xf32>
    %163 = arith.addf %161, %162 : vector<16x32xf32>
    %c0_54 = arith.constant 0 : index
    %c0_55 = arith.constant 0 : index
    %164 = vector.load %arg5[%c0_54, %c0_55] : memref<16x32xf32, #tpu.memory_space<vmem>>, vector<16x32xf32>
    tpu.vector_store %arg5[%c0_54, %c0_55], %163 {strides = array<i32>} : memref<16x32xf32, #tpu.memory_space<vmem>>, vector<16x32xf32>,
    return
  }
}

</mosaic_0001>

<llo_original>
// kernel: transformer_encoder_layer_forward.1
$region0: #{transformer_encoder_layer_forward.1}
  #allocation0 [shape = 'u32[]', space=smem, size = 0x4, offset = 0x4, fixed_abs, tag = 'smem constant byte address 0x4 - core index']
  #allocation1 [shape = 'u32[144,128]{1,0:T(1,128)}', space=vmem, size = 0x12000, scoped, tag = 'internal scratch']
  %s0 = inlined_call_operand.vmem [shape: f32[16,32], index: 0, kind: input, shape index: {}]
  %s1 = inlined_call_operand.vmem [shape: f32[16,32], index: 1, kind: input, shape index: {}]
  %s2 = inlined_call_operand.vmem [shape: f32[32,96], index: 2, kind: input, shape index: {}]
  %s3 = inlined_call_operand.vmem [shape: f32[128,64], index: 3, kind: input, shape index: {}]
  %s4 = inlined_call_operand.vmem [shape: f32[8,96], index: 4, kind: input, shape index: {}]
  %s5 = inlined_call_operand.hbm [shape: f32[16,32], index: 5, kind: output, shape index: {0}]
  %s6 = inlined_call_operand.hbm [shape: f32[16,8], index: 6, kind: output, shape index: {1}]
  %7 = xla_tuple %s5, %s6
  %s8 = sld [smem:[#allocation0]]
  $region38: #{transformer_encoder_layer_forward.1} parent=0
    _
  %s10 = ssub.s32 1, %s8
  %s11 = scalar_select 0, %s10, %s8
  $region1: #{transformer_encoder_layer_forward.1} parent=0
    #allocation2 [shape = 'u8[8192]{0}', space=vmem, size = 0x2000, scoped, tag = 'output window, operand 0, single buffered']
    #allocation3 [shape = 's32[1]{0}', space=sflag, size = 0x4, scoped, tag = 'scoped memory for transformer_encoder_layer_forward.1']
    #allocation4 [shape = 'u8[8192]{0}', space=vmem, size = 0x2000, scoped, tag = 'output window, operand 1, single buffered']
    #allocation5 [shape = 's32[1]{0}', space=sflag, size = 0x4, scoped, tag = 'scoped memory for transformer_encoder_layer_forward.1']
    %12 = vsyncpa [#allocation3], 0
    %13 = vsyncpa [#allocation5], 0
    // Predicated region
    $region2: #{transformer_encoder_layer_forward.1} parent=1 // pred_check
      _
    $region3: #{transformer_encoder_layer_forward.1} parent=1 // pred_check_branch
      %15 = sbr.rel (0) target = $region5
    $region4: #{transformer_encoder_layer_forward.1} parent=1 // pred_region
      _
    $region5: #{transformer_encoder_layer_forward.1} parent=1 // pred_fallthru
      _
    // Predicated region
    $region6: #{transformer_encoder_layer_forward.1} parent=1 // pred_check
      _
    $region7: #{transformer_encoder_layer_forward.1} parent=1 // pred_check_branch
      %17 = sbr.rel (0) target = $region9
    $region8: #{transformer_encoder_layer_forward.1} parent=1 // pred_region
      _
    $region9: #{transformer_encoder_layer_forward.1} parent=1 // pred_fallthru
      _
    // Predicated region
    $region10: #{transformer_encoder_layer_forward.1} parent=1 // pred_check
      _
    $region11: #{transformer_encoder_layer_forward.1} parent=1 // pred_check_branch
      %19 = sbr.rel (0) target = $region13
    $region12: #{transformer_encoder_layer_forward.1} parent=1 // pred_region
      _
    $region13: #{transformer_encoder_layer_forward.1} parent=1 // pred_fallthru
      _
    // Predicated region
    $region14: #{transformer_encoder_layer_forward.1} parent=1 // pred_check
      _
    $region15: #{transformer_encoder_layer_forward.1} parent=1 // pred_check_branch
      %21 = sbr.rel (0) target = $region17
    $region16: #{transformer_encoder_layer_forward.1} parent=1 // pred_region
      _
    $region17: #{transformer_encoder_layer_forward.1} parent=1 // pred_fallthru
      _
    // Predicated region
    $region18: #{transformer_encoder_layer_forward.1} parent=1 // pred_check
      _
    $region19: #{transformer_encoder_layer_forward.1} parent=1 // pred_check_branch
      %23 = sbr.rel (0) target = $region21
    $region20: #{transformer_encoder_layer_forward.1} parent=1 // pred_region
      _
    $region21: #{transformer_encoder_layer_forward.1} parent=1 // pred_fallthru
      _
    %v24 = vld [vmem:[%s0] sm:$0xff]
    %v25 = vld [vmem:[%s0 + $0x8] sm:$0xff]
    %v26 = vld [vmem:[%s1] sm:$0xff]
    %v27 = vld [vmem:[%s1 + $0x8] sm:$0xff]
    %v28 = vld [vmem:[%s4] sm:$0xff]
    %v29 = vadd.f32 %v24, %v26
    %v30 = vadd.f32 %v25, %v27
    %v31 = vld [vmem:[%s2] sm:$0xff]
    %v32 = vld [vmem:[%s2 + $0x8] sm:$0xff]
    %v33 = vld [vmem:[%s2 + $0x10] sm:$0xff]
    %v34 = vld [vmem:[%s2 + $0x18] sm:$0xff]
    %v35 = vlaneseq
    %v36 = vshrl.u32 %v35, 7
    %v37 = vsub.s32 0, %v36
    %v38 = vrot.slane %v28, %v37
    %vm39 = vcmask 261120
    %v41 = vsel %vm39, %v29, 0
    %v44 = vsel %vm39, %v30, 0
    %v47 = vsel %vm39, %v24, 0
    %v50 = vsel %vm39, %v25, 0
    %52 = vmatprep.subr.mxu0 0.0
    %53 = vmatpush1.msra.mxu0 %v31
    %54 = vmatprep.subr.mxu0 0.0
    %55 = vmatpush1.msra.mxu0 %v32
    %56 = vmatprep.subr.mxu0 0.0
    %57 = vmatpush1.msra.mxu0 %v33
    %58 = vmatprep.subr.mxu0 0.0
    %59 = vmatpush1.msra.mxu0 %v34
    %60 = vmatprep.subr.mxu0 0.0
    %61 = vmatpush1.msra.mxu0 0.0
    %62 = vmatprep.subr.mxu0 0.0
    %63 = vmatpush1.msra.mxu0 0.0
    %64 = vmatprep.subr.mxu0 0.0
    %65 = vmatpush1.msra.mxu0 0.0
    %66 = vmatprep.subr.mxu0 0.0
    %67 = vmatpush1.msra.mxu0 0.0
    %68 = vmatprep.subr.mxu0 0.0
    %69 = vmatpush1.msra.mxu0 0.0
    %70 = vmatprep.subr.mxu0 0.0
    %71 = vmatpush1.msra.mxu0 0.0
    %72 = vmatprep.subr.mxu0 0.0
    %73 = vmatpush1.msra.mxu0 0.0
    %74 = vmatprep.subr.mxu0 0.0
    %75 = vmatpush1.msra.mxu0 0.0
    %76 = vmatprep.subr.mxu0 0.0
    %77 = vmatpush1.msra.mxu0 0.0
    %78 = vmatprep.subr.mxu0 0.0
    %79 = vmatpush1.msra.mxu0 0.0
    %80 = vmatprep.subr.mxu0 0.0
    %81 = vmatpush1.msra.mxu0 0.0
    %82 = vmatprep.subr.mxu0 0.0
    %83 = vmatpush1.msra.mxu0 0.0
    %84 = vmatprep.subr.mxu0 0.0
    %85 = vmatpush1.msra.mxu0 0.0
    %86 = vmatprep.subr.mxu0 0.0
    %87 = vmatpush1.msra.mxu0 0.0
    %88 = vmatprep.subr.mxu0 0.0
    %89 = vmatpush1.msra.mxu0 0.0
    %90 = vmatprep.subr.mxu0 0.0
    %91 = vmatpush1.msra.mxu0 0.0
    %92 = vmatprep.subr.mxu0 0.0
    %93 = vmatpush1.msra.mxu0 0.0
    %94 = vmatprep.subr.mxu0 0.0
    %95 = vmatpush1.msra.mxu0 0.0
    %96 = vmatprep.subr.mxu0 0.0
    %97 = vmatpush1.msra.mxu0 0.0
    %98 = vmatprep.subr.mxu0 0.0
    %99 = vmatpush1.msra.mxu0 0.0
    %100 = vmatprep.subr.mxu0 0.0
    %101 = vmatpush1.msra.mxu0 0.0
    %102 = vmatprep.subr.mxu0 0.0
    %103 = vmatpush1.msra.mxu0 0.0
    %104 = vmatprep.subr.mxu0 0.0
    %105 = vmatpush1.msra.mxu0 0.0
    %106 = vmatprep.subr.mxu0 0.0
    %107 = vmatpush1.msra.mxu0 0.0
    %108 = vmatprep.subr.mxu0 0.0
    %109 = vmatpush1.msra.mxu0 0.0
    %110 = vmatprep.subr.mxu0 0.0
    %111 = vmatpush1.msra.mxu0 0.0
    %112 = vmatprep.subr.mxu0 0.0
    %113 = vmatpush1.msra.mxu0 0.0
    %114 = vmatprep.subr.mxu0 0.0
    %115 = vmatpush1.msra.mxu0 0.0
    %116 = vmatprep.mubr.f32.mxu0 0.0
    %117 = vmatmul.mubr.f32.gmra.mrb[0].mxu0 %v41
    %v118 = vpop.f32.mrb[0].mxu0
    %v119 = vadd.f32 %v38, %v118
    %v120 = vpop.f32.mrb[0].mxu0
    %121 = vmatprep.mubr.f32.mxu0 0.0
    %122 = vmatmul.mubr.f32.gmra.mrb[0].mxu0 %v44
    %v123 = vpop.f32.mrb[0].mxu0
    %v124 = vadd.f32 %v38, %v123
    %v125 = vpop.f32.mrb[0].mxu0
    %126 = vmatprep.mubr.f32.mxu0 0.0
    %127 = vmatmul.mubr.f32.gmra.mrb[0].mxu0 %v47
    %v128 = vpop.f32.mrb[0].mxu0
    %v129 = vadd.f32 %v38, %v128
    %v130 = vpop.f32.mrb[0].mxu0
    %131 = vmatprep.mubr.f32.mxu0 0.0
    %132 = vmatmul.mubr.f32.gmra.mrb[0].mxu0 %v50
    %v133 = vpop.f32.mrb[0].mxu0
    %v134 = vadd.f32 %v38, %v133
    %v135 = vpop.f32.mrb[0].mxu0
    %136 = vdwg.mxu0
    %v137 = vlaneseq
    %v138 = vand.u32 %v137, 127
    %v139 = vshra.s32 %v138, 3
    %vm140 = vcmp.eq.s32.totalorder %v139, 0
    %v141 = vsel %vm140, %v119, 0.0
    %v142 = vsel %vm140, %v124, 0.0
    %vm143 = vcmp.eq.s32.totalorder %v139, 1
    %v144 = vsel %vm143, %v119, 0.0
    %v145 = vsel %vm143, %v124, 0.0
    %vm146 = vcmp.eq.s32.totalorder %v139, 2
    %v147 = vsel %vm146, %v119, 0.0
    %v148 = vsel %vm146, %v124, 0.0
    %vm149 = vcmp.eq.s32.totalorder %v139, 3
    %v150 = vsel %vm149, %v119, 0.0
    %v151 = vsel %vm149, %v124, 0.0
    %154 = vrot.lane.b32.xlu0 %v119, 96
    %v155 = vpop.permute.xlu0 %154
    %156 = vrot.lane.b32.xlu0 %v124, 96
    %v157 = vpop.permute.xlu0 %156
    %v159 = vsel %vm39, %v141, 0
    %v162 = vsel %vm39, %v142, 0
    %v165 = vsel %vm39, %v144, 0
    %v168 = vsel %vm39, %v145, 0
    %v171 = vsel %vm39, %v147, 0
    %v174 = vsel %vm39, %v148, 0
    %v177 = vsel %vm39, %v150, 0
    %v180 = vsel %vm39, %v151, 0
    %v182 = vsel %vm39, %v155, 0
    %v184 = vsel %vm39, %v157, 0
    %186 = vmatprep.subr.mxu0 0.0
    %187 = vmatpush1.xpose.msra.mxu0 %v182
    %188 = vmatprep.subr.mxu0 0.0
    %189 = vmatpush1.xpose.msra.mxu0 %v184
    %190 = vmatprep.subr.mxu0 0.0
    %191 = vmatpush1.xpose.msra.mxu0 0.0
    %192 = vmatprep.subr.mxu0 0.0
    %193 = vmatpush1.xpose.msra.mxu0 0.0
    %194 = vmatprep.subr.mxu0 0.0
    %195 = vmatpush1.xpose.msra.mxu0 0.0
    %196 = vmatprep.subr.mxu0 0.0
    %197 = vmatpush1.xpose.msra.mxu0 0.0
    %198 = vmatprep.subr.mxu0 0.0
    %199 = vmatpush1.xpose.msra.mxu0 0.0
    %200 = vmatprep.subr.mxu0 0.0
    %201 = vmatpush1.xpose.msra.mxu0 0.0
    %202 = vmatprep.subr.mxu0 0.0
    %203 = vmatpush1.xpose.msra.mxu0 0.0
    %204 = vmatprep.subr.mxu0 0.0
    %205 = vmatpush1.xpose.msra.mxu0 0.0
    %206 = vmatprep.subr.mxu0 0.0
    %207 = vmatpush1.xpose.msra.mxu0 0.0
    %208 = vmatprep.subr.mxu0 0.0
    %209 = vmatpush1.xpose.msra.mxu0 0.0
    %210 = vmatprep.subr.mxu0 0.0
    %211 = vmatpush1.xpose.msra.mxu0 0.0
    %212 = vmatprep.subr.mxu0 0.0
    %213 = vmatpush1.xpose.msra.mxu0 0.0
    %214 = vmatprep.subr.mxu0 0.0
    %215 = vmatpush1.xpose.msra.mxu0 0.0
    %216 = vmatprep.subr.mxu0 0.0
    %217 = vmatpush1.xpose.msra.mxu0 0.0
    %218 = vmatprep.subr.mxu0 0.0
    %219 = vmatpush1.xpose.msra.mxu0 0.0
    %220 = vmatprep.subr.mxu0 0.0
    %221 = vmatpush1.xpose.msra.mxu0 0.0
    %222 = vmatprep.subr.mxu0 0.0
    %223 = vmatpush1.xpose.msra.mxu0 0.0
    %224 = vmatprep.subr.mxu0 0.0
    %225 = vmatpush1.xpose.msra.mxu0 0.0
    %226 = vmatprep.subr.mxu0 0.0
    %227 = vmatpush1.xpose.msra.mxu0 0.0
    %228 = vmatprep.subr.mxu0 0.0
    %229 = vmatpush1.xpose.msra.mxu0 0.0
    %230 = vmatprep.subr.mxu0 0.0
    %231 = vmatpush1.xpose.msra.mxu0 0.0
    %232 = vmatprep.subr.mxu0 0.0
    %233 = vmatpush1.xpose.msra.mxu0 0.0
    %234 = vmatprep.subr.mxu0 0.0
    %235 = vmatpush1.xpose.msra.mxu0 0.0
    %236 = vmatprep.subr.mxu0 0.0
    %237 = vmatpush1.xpose.msra.mxu0 0.0
    %238 = vmatprep.subr.mxu0 0.0
    %239 = vmatpush1.xpose.msra.mxu0 0.0
    %240 = vmatprep.subr.mxu0 0.0
    %241 = vmatpush1.xpose.msra.mxu0 0.0
    %242 = vmatprep.subr.mxu0 0.0
    %243 = vmatpush1.xpose.msra.mxu0 0.0
    %244 = vmatprep.subr.mxu0 0.0
    %245 = vmatpush1.xpose.msra.mxu0 0.0
    %246 = vmatprep.subr.mxu0 0.0
    %247 = vmatpush1.xpose.msra.mxu0 0.0
    %248 = vmatprep.subr.mxu0 0.0
    %249 = vmatpush1.xpose.msra.mxu0 0.0
    %250 = vmatprep.mubr.f32.mxu0 0.0
    %251 = vmatmul.mubr.f32.gmra.mrb[0].mxu0 %v159
    %v252 = vpop.f32.mrb[0].mxu0
    %v253 = vadd.f32 0.0, %v252
    %v254 = vpop.f32.mrb[0].mxu0
    %255 = vmatprep.mubr.f32.mxu0 0.0
    %256 = vmatmul.mubr.f32.gmra.mrb[0].mxu0 %v162
    %v257 = vpop.f32.mrb[0].mxu0
    %v258 = vadd.f32 0.0, %v257
    %v259 = vpop.f32.mrb[0].mxu0
    %260 = vmatprep.mubr.f32.mxu0 0.0
    %261 = vmatmul.mubr.f32.gmra.mrb[0].mxu0 %v165
    %v262 = vpop.f32.mrb[0].mxu0
    %v263 = vadd.f32 0.0, %v262
    %v264 = vpop.f32.mrb[0].mxu0
    %265 = vmatprep.mubr.f32.mxu0 0.0
    %266 = vmatmul.mubr.f32.gmra.mrb[0].mxu0 %v168
    %v267 = vpop.f32.mrb[0].mxu0
    %v268 = vadd.f32 0.0, %v267
    %v269 = vpop.f32.mrb[0].mxu0
    %270 = vmatprep.mubr.f32.mxu0 0.0
    %271 = vmatmul.mubr.f32.gmra.mrb[0].mxu0 %v171
    %v272 = vpop.f32.mrb[0].mxu0
    %v273 = vadd.f32 0.0, %v272
    %v274 = vpop.f32.mrb[0].mxu0
    %275 = vmatprep.mubr.f32.mxu0 0.0
    %276 = vmatmul.mubr.f32.gmra.mrb[0].mxu0 %v174
    %v277 = vpop.f32.mrb[0].mxu0
    %v278 = vadd.f32 0.0, %v277
    %v279 = vpop.f32.mrb[0].mxu0
    %280 = vmatprep.mubr.f32.mxu0 0.0
    %281 = vmatmul.mubr.f32.gmra.mrb[0].mxu0 %v177
    %v282 = vpop.f32.mrb[0].mxu0
    %v283 = vadd.f32 0.0, %v282
    %v284 = vpop.f32.mrb[0].mxu0
    %285 = vmatprep.mubr.f32.mxu0 0.0
    %286 = vmatmul.mubr.f32.gmra.mrb[0].mxu0 %v180
    %v287 = vpop.f32.mrb[0].mxu0
    %v288 = vadd.f32 0.0, %v287
    %v289 = vpop.f32.mrb[0].mxu0
    %290 = vdwg.mxu0
    %v291 = vlaneseq
    %v292 = vshrl.u32 %v291, 7
    %v293 = vadd.s32 %v292, 8
    %v294 = vadd.s32 %v292, 16
    %v295 = vadd.s32 %v292, 24
    %v296 = vadd.s32 %v292, 32
    %v297 = vadd.s32 %v292, 40
    %v298 = vadd.s32 %v292, 48
    %v299 = vadd.s32 %v292, 56
    %v300 = vand.u32 %v292, 1
    %v301 = vand.u32 %v293, 1
    %v302 = vand.u32 %v294, 1
    %v303 = vand.u32 %v295, 1
    %v304 = vand.u32 %v296, 1
    %v305 = vand.u32 %v297, 1
    %v306 = vand.u32 %v298, 1
    %v307 = vand.u32 %v299, 1
    %v308 = vand.u32 %v138, 1
    %vm309 = vcmp.eq.s32.totalorder %v300, %v308
    %vm310 = vcmp.eq.s32.totalorder %v301, %v308
    %vm311 = vcmp.eq.s32.totalorder %v302, %v308
    %vm312 = vcmp.eq.s32.totalorder %v303, %v308
    %vm313 = vcmp.eq.s32.totalorder %v304, %v308
    %vm314 = vcmp.eq.s32.totalorder %v305, %v308
    %vm315 = vcmp.eq.s32.totalorder %v306, %v308
    %vm316 = vcmp.eq.s32.totalorder %v307, %v308
    %v317 = vsel %vm309, %v253, -1e+30
    %v318 = vsel %vm310, %v258, -1e+30
    %v319 = vsel %vm311, %v263, -1e+30
    %v320 = vsel %vm312, %v268, -1e+30
    %v321 = vsel %vm313, %v273, -1e+30
    %v322 = vsel %vm314, %v278, -1e+30
    %v323 = vsel %vm315, %v283, -1e+30
    %v324 = vsel %vm316, %v288, -1e+30
    %vm325 = vcmask 130048
    %v326 = vsel %vm325, %v317, -inf
    %327 = vmax.xlane.f32.xlu0 %v326
    %v328 = vpop.xlane.xlu0 %327
    %v329 = vsel %vm325, %v318, -inf
    %330 = vmax.xlane.f32.xlu0 %v329
    %v331 = vpop.xlane.xlu0 %330
    %v332 = vsel %vm325, %v319, -inf
    %333 = vmax.xlane.f32.xlu0 %v332
    %v334 = vpop.xlane.xlu0 %333
    %v335 = vsel %vm325, %v320, -inf
    %336 = vmax.xlane.f32.xlu0 %v335
    %v337 = vpop.xlane.xlu0 %336
    %v338 = vsel %vm325, %v321, -inf
    %339 = vmax.xlane.f32.xlu0 %v338
    %v340 = vpop.xlane.xlu0 %339
    %v341 = vsel %vm325, %v322, -inf
    %342 = vmax.xlane.f32.xlu0 %v341
    %v343 = vpop.xlane.xlu0 %342
    %v344 = vsel %vm325, %v323, -inf
    %345 = vmax.xlane.f32.xlu0 %v344
    %v346 = vpop.xlane.xlu0 %345
    %v347 = vsel %vm325, %v324, -inf
    %348 = vmax.xlane.f32.xlu0 %v347
    %v349 = vpop.xlane.xlu0 %348
    %v350 = vsub.f32 %v317, %v328
    %v351 = vsub.f32 %v318, %v331
    %v352 = vsub.f32 %v319, %v334
    %v353 = vsub.f32 %v320, %v337
    %v354 = vsub.f32 %v321, %v340
    %v355 = vsub.f32 %v322, %v343
    %v356 = vsub.f32 %v323, %v346
    %v357 = vsub.f32 %v324, %v349
    %v358 = vmul.f32 %v350, 1.442695
    %v359 = vpow.pop %v358
    %v360 = vmul.f32 %v351, 1.442695
    %v361 = vpow.pop %v360
    %v362 = vmul.f32 %v352, 1.442695
    %v363 = vpow.pop %v362
    %v364 = vmul.f32 %v353, 1.442695
    %v365 = vpow.pop %v364
    %v366 = vmul.f32 %v354, 1.442695
    %v367 = vpow.pop %v366
    %v368 = vmul.f32 %v355, 1.442695
    %v369 = vpow.pop %v368
    %v370 = vmul.f32 %v356, 1.442695
    %v371 = vpow.pop %v370
    %v372 = vmul.f32 %v357, 1.442695
    %v373 = vpow.pop %v372
    %v374 = vsel %vm325, %v359, 0.0
    %375 = vadd.xlane.f32.xlu0 %v374
    %v376 = vpop.xlane.xlu0 %375
    %v377 = vsel %vm325, %v361, 0.0
    %378 = vadd.xlane.f32.xlu0 %v377
    %v379 = vpop.xlane.xlu0 %378
    %v380 = vsel %vm325, %v363, 0.0
    %381 = vadd.xlane.f32.xlu0 %v380
    %v382 = vpop.xlane.xlu0 %381
    %v383 = vsel %vm325, %v365, 0.0
    %384 = vadd.xlane.f32.xlu0 %v383
    %v385 = vpop.xlane.xlu0 %384
    %v386 = vsel %vm325, %v367, 0.0
    %387 = vadd.xlane.f32.xlu0 %v386
    %v388 = vpop.xlane.xlu0 %387
    %v389 = vsel %vm325, %v369, 0.0
    %390 = vadd.xlane.f32.xlu0 %v389
    %v391 = vpop.xlane.xlu0 %390
    %v392 = vsel %vm325, %v371, 0.0
    %393 = vadd.xlane.f32.xlu0 %v392
    %v394 = vpop.xlane.xlu0 %393
    %v395 = vsel %vm325, %v373, 0.0
    %396 = vadd.xlane.f32.xlu0 %v395
    %v397 = vpop.xlane.xlu0 %396
    %v398 = vrcp.pop %v376
    %v399 = vmul.f32 %v359, %v398
    %v400 = vrcp.pop %v379
    %v401 = vmul.f32 %v361, %v400
    %v402 = vrcp.pop %v382
    %v403 = vmul.f32 %v363, %v402
    %v404 = vrcp.pop %v385
    %v405 = vmul.f32 %v365, %v404
    %v406 = vrcp.pop %v388
    %v407 = vmul.f32 %v367, %v406
    %v408 = vrcp.pop %v391
    %v409 = vmul.f32 %v369, %v408
    %v410 = vrcp.pop %v394
    %v411 = vmul.f32 %v371, %v410
    %v412 = vrcp.pop %v397
    %v413 = vmul.f32 %v373, %v412
    %416 = vrot.lane.b32.xlu0 %v129, 64
    %v417 = vpop.permute.xlu0 %416
    %418 = vrot.lane.b32.xlu0 %v134, 64
    %v419 = vpop.permute.xlu0 %418
    %v423 = vsel %vm325, %v399, 0
    %v426 = vsel %vm325, %v401, 0
    %v429 = vsel %vm325, %v403, 0
    %v432 = vsel %vm325, %v405, 0
    %v435 = vsel %vm325, %v407, 0
    %v438 = vsel %vm325, %v409, 0
    %v441 = vsel %vm325, %v411, 0
    %v444 = vsel %vm325, %v413, 0
    %446 = vmatprep.subr.mxu0 0.0
    %447 = vmatpush1.msra.mxu0 %v417
    %448 = vmatprep.subr.mxu0 0.0
    %449 = vmatpush1.msra.mxu0 %v419
    %450 = vmatprep.subr.mxu0 0.0
    %451 = vmatpush1.msra.mxu0 0.0
    %452 = vmatprep.subr.mxu0 0.0
    %453 = vmatpush1.msra.mxu0 0.0
    %454 = vmatprep.subr.mxu0 0.0
    %455 = vmatpush1.msra.mxu0 0.0
    %456 = vmatprep.subr.mxu0 0.0
    %457 = vmatpush1.msra.mxu0 0.0
    %458 = vmatprep.subr.mxu0 0.0
    %459 = vmatpush1.msra.mxu0 0.0
    %460 = vmatprep.subr.mxu0 0.0
    %461 = vmatpush1.msra.mxu0 0.0
    %462 = vmatprep.subr.mxu0 0.0
    %463 = vmatpush1.msra.mxu0 0.0
    %464 = vmatprep.subr.mxu0 0.0
    %465 = vmatpush1.msra.mxu0 0.0
    %466 = vmatprep.subr.mxu0 0.0
    %467 = vmatpush1.msra.mxu0 0.0
    %468 = vmatprep.subr.mxu0 0.0
    %469 = vmatpush1.msra.mxu0 0.0
    %470 = vmatprep.subr.mxu0 0.0
    %471 = vmatpush1.msra.mxu0 0.0
    %472 = vmatprep.subr.mxu0 0.0
    %473 = vmatpush1.msra.mxu0 0.0
    %474 = vmatprep.subr.mxu0 0.0
    %475 = vmatpush1.msra.mxu0 0.0
    %476 = vmatprep.subr.mxu0 0.0
    %477 = vmatpush1.msra.mxu0 0.0
    %478 = vmatprep.subr.mxu0 0.0
    %479 = vmatpush1.msra.mxu0 0.0
    %480 = vmatprep.subr.mxu0 0.0
    %481 = vmatpush1.msra.mxu0 0.0
    %482 = vmatprep.subr.mxu0 0.0
    %483 = vmatpush1.msra.mxu0 0.0
    %484 = vmatprep.subr.mxu0 0.0
    %485 = vmatpush1.msra.mxu0 0.0
    %486 = vmatprep.subr.mxu0 0.0
    %487 = vmatpush1.msra.mxu0 0.0
    %488 = vmatprep.subr.mxu0 0.0
    %489 = vmatpush1.msra.mxu0 0.0
    %490 = vmatprep.subr.mxu0 0.0
    %491 = vmatpush1.msra.mxu0 0.0
    %492 = vmatprep.subr.mxu0 0.0
    %493 = vmatpush1.msra.mxu0 0.0
    %494 = vmatprep.subr.mxu0 0.0
    %495 = vmatpush1.msra.mxu0 0.0
    %496 = vmatprep.subr.mxu0 0.0
    %497 = vmatpush1.msra.mxu0 0.0
    %498 = vmatprep.subr.mxu0 0.0
    %499 = vmatpush1.msra.mxu0 0.0
    %500 = vmatprep.subr.mxu0 0.0
    %501 = vmatpush1.msra.mxu0 0.0
    %502 = vmatprep.subr.mxu0 0.0
    %503 = vmatpush1.msra.mxu0 0.0
    %504 = vmatprep.subr.mxu0 0.0
    %505 = vmatpush1.msra.mxu0 0.0
    %506 = vmatprep.subr.mxu0 0.0
    %507 = vmatpush1.msra.mxu0 0.0
    %508 = vmatprep.subr.mxu0 0.0
    %509 = vmatpush1.msra.mxu0 0.0
    %510 = vmatprep.mubr.f32.mxu0 0.0
    %511 = vmatmul.mubr.f32.gmra.mrb[0].mxu0 %v423
    %v512 = vpop.f32.mrb[0].mxu0
    %v513 = vadd.f32 0.0, %v512
    %v514 = vpop.f32.mrb[0].mxu0
    %515 = vmatprep.mubr.f32.mxu0 0.0
    %516 = vmatmul.mubr.f32.gmra.mrb[0].mxu0 %v426
    %v517 = vpop.f32.mrb[0].mxu0
    %v518 = vadd.f32 0.0, %v517
    %v519 = vpop.f32.mrb[0].mxu0
    %520 = vmatprep.mubr.f32.mxu0 0.0
    %521 = vmatmul.mubr.f32.gmra.mrb[0].mxu0 %v429
    %v522 = vpop.f32.mrb[0].mxu0
    %v523 = vadd.f32 0.0, %v522
    %v524 = vpop.f32.mrb[0].mxu0
    %525 = vmatprep.mubr.f32.mxu0 0.0
    %526 = vmatmul.mubr.f32.gmra.mrb[0].mxu0 %v432
    %v527 = vpop.f32.mrb[0].mxu0
    %v528 = vadd.f32 0.0, %v527
    %v529 = vpop.f32.mrb[0].mxu0
    %530 = vmatprep.mubr.f32.mxu0 0.0
    %531 = vmatmul.mubr.f32.gmra.mrb[0].mxu0 %v435
    %v532 = vpop.f32.mrb[0].mxu0
    %v533 = vadd.f32 0.0, %v532
    %v534 = vpop.f32.mrb[0].mxu0
    %535 = vmatprep.mubr.f32.mxu0 0.0
    %536 = vmatmul.mubr.f32.gmra.mrb[0].mxu0 %v438
    %v537 = vpop.f32.mrb[0].mxu0
    %v538 = vadd.f32 0.0, %v537
    %v539 = vpop.f32.mrb[0].mxu0
    %540 = vmatprep.mubr.f32.mxu0 0.0
    %541 = vmatmul.mubr.f32.gmra.mrb[0].mxu0 %v441
    %v542 = vpop.f32.mrb[0].mxu0
    %v543 = vadd.f32 0.0, %v542
    %v544 = vpop.f32.mrb[0].mxu0
    %545 = vmatprep.mubr.f32.mxu0 0.0
    %546 = vmatmul.mubr.f32.gmra.mrb[0].mxu0 %v444
    %v547 = vpop.f32.mrb[0].mxu0
    %v548 = vadd.f32 0.0, %v547
    %v549 = vpop.f32.mrb[0].mxu0
    %550 = vdwg.mxu0
    %v551 = vsel %vm140, %v513, 0.0
    %v552 = vsel %vm140, %v518, 0.0
    %v553 = vsel %vm143, %v523, 0.0
    %v554 = vsel %vm143, %v528, 0.0
    %v555 = vadd.f32 %v551, %v553
    %v556 = vadd.f32 %v552, %v554
    %v557 = vsel %vm146, %v533, 0.0
    %v558 = vsel %vm146, %v538, 0.0
    %v559 = vadd.f32 %v555, %v557
    %v560 = vadd.f32 %v556, %v558
    %v561 = vsel %vm149, %v543, 0.0
    %v562 = vsel %vm149, %v548, 0.0
    %v563 = vadd.f32 %v559, %v561
    %v564 = vadd.f32 %v560, %v562
    %v565 = vand.u32 %v292, 7
    %v566 = vand.u32 %v293, 7
    %v567 = vmul.u32 %v565, 2
    %v568 = vmul.u32 %v566, 2
    %v569 = vshra.s32 %v292, 3
    %v570 = vshra.s32 %v293, 3
    %v571 = vadd.s32 %v567, %v569
    %v572 = vadd.s32 %v568, %v570
    %v573 = vand.u32 %v138, 15
    %vm574 = vcmp.eq.s32.totalorder %v573, %v571
    %vm575 = vcmp.eq.s32.totalorder %v573, %v572
    %v576 = vsel %vm574, 1, 0
    %v577 = vsel %vm575, 1, 0
    %v578 = vcvt.s32.f32 %v576
    %v579 = vcvt.s32.f32 %v577
    %v580 = vshra.s32 %v292, 1
    %v581 = vshra.s32 %v293, 1
    %vm582 = vcmp.eq.s32.totalorder %v580, %v138
    %vm583 = vcmp.eq.s32.totalorder %v581, %v138
    %v584 = vsel %vm582, 0.25, 0.0
    %v585 = vsel %vm583, 0.25, 0.0
    %vm586 = vcmask 523264
    %v588 = vsel %vm586, %v578, 0
    %v591 = vsel %vm586, %v579, 0
    %593 = vmatprep.subr.mxu0 0.0
    %594 = vmatpush1.msra.mxu0 %v399
    %595 = vmatprep.subr.mxu0 0.0
    %596 = vmatpush1.msra.mxu0 %v401
    %597 = vmatprep.subr.mxu0 0.0
    %598 = vmatpush1.msra.mxu0 %v403
    %599 = vmatprep.subr.mxu0 0.0
    %600 = vmatpush1.msra.mxu0 %v405
    %601 = vmatprep.subr.mxu0 0.0
    %602 = vmatpush1.msra.mxu0 %v407
    %603 = vmatprep.subr.mxu0 0.0
    %604 = vmatpush1.msra.mxu0 %v409
    %605 = vmatprep.subr.mxu0 0.0
    %606 = vmatpush1.msra.mxu0 %v411
    %607 = vmatprep.subr.mxu0 0.0
    %608 = vmatpush1.msra.mxu0 %v413
    %609 = vmatprep.subr.mxu0 0.0
    %610 = vmatpush1.msra.mxu0 0.0
    %611 = vmatprep.subr.mxu0 0.0
    %612 = vmatpush1.msra.mxu0 0.0
    %613 = vmatprep.subr.mxu0 0.0
    %614 = vmatpush1.msra.mxu0 0.0
    %615 = vmatprep.subr.mxu0 0.0
    %616 = vmatpush1.msra.mxu0 0.0
    %617 = vmatprep.subr.mxu0 0.0
    %618 = vmatpush1.msra.mxu0 0.0
    %619 = vmatprep.subr.mxu0 0.0
    %620 = vmatpush1.msra.mxu0 0.0
    %621 = vmatprep.subr.mxu0 0.0
    %622 = vmatpush1.msra.mxu0 0.0
    %623 = vmatprep.subr.mxu0 0.0
    %624 = vmatpush1.msra.mxu0 0.0
    %625 = vmatprep.subr.mxu0 0.0
    %626 = vmatpush1.msra.mxu0 0.0
    %627 = vmatprep.subr.mxu0 0.0
    %628 = vmatpush1.msra.mxu0 0.0
    %629 = vmatprep.subr.mxu0 0.0
    %630 = vmatpush1.msra.mxu0 0.0
    %631 = vmatprep.subr.mxu0 0.0
    %632 = vmatpush1.msra.mxu0 0.0
    %633 = vmatprep.subr.mxu0 0.0
    %634 = vmatpush1.msra.mxu0 0.0
    %635 = vmatprep.subr.mxu0 0.0
    %636 = vmatpush1.msra.mxu0 0.0
    %637 = vmatprep.subr.mxu0 0.0
    %638 = vmatpush1.msra.mxu0 0.0
    %639 = vmatprep.subr.mxu0 0.0
    %640 = vmatpush1.msra.mxu0 0.0
    %641 = vmatprep.subr.mxu0 0.0
    %642 = vmatpush1.msra.mxu0 0.0
    %643 = vmatprep.subr.mxu0 0.0
    %644 = vmatpush1.msra.mxu0 0.0
    %645 = vmatprep.subr.mxu0 0.0
    %646 = vmatpush1.msra.mxu0 0.0
    %647 = vmatprep.subr.mxu0 0.0
    %648 = vmatpush1.msra.mxu0 0.0
    %649 = vmatprep.subr.mxu0 0.0
    %650 = vmatpush1.msra.mxu0 0.0
    %651 = vmatprep.subr.mxu0 0.0
    %652 = vmatpush1.msra.mxu0 0.0
    %653 = vmatprep.subr.mxu0 0.0
    %654 = vmatpush1.msra.mxu0 0.0
    %655 = vmatprep.subr.mxu0 0.0
    %656 = vmatpush1.msra.mxu0 0.0
    %657 = vmatprep.mubr.f32.mxu0 0.0
    %658 = vmatmul.mubr.f32.gmra.mrb[0].mxu0 %v588
    %v659 = vpop.f32.mrb[0].mxu0
    %v660 = vadd.f32 0.0, %v659
    %v661 = vpop.f32.mrb[0].mxu0
    %662 = vmatprep.mubr.f32.mxu0 0.0
    %663 = vmatmul.mubr.f32.gmra.mrb[0].mxu0 %v591
    %v664 = vpop.f32.mrb[0].mxu0
    %v665 = vadd.f32 0.0, %v664
    %v666 = vpop.f32.mrb[0].mxu0
    %667 = vdwg.mxu0
    %v669 = vsel %vm325, %v660, 0
    %v672 = vsel %vm325, %v665, 0
    %674 = vmatprep.subr.mxu0 0.0
    %675 = vmatpush1.msra.mxu0 %v584
    %676 = vmatprep.subr.mxu0 0.0
    %677 = vmatpush1.msra.mxu0 %v585
    %678 = vmatprep.subr.mxu0 0.0
    %679 = vmatpush1.msra.mxu0 0.0
    %680 = vmatprep.subr.mxu0 0.0
    %681 = vmatpush1.msra.mxu0 0.0
    %682 = vmatprep.subr.mxu0 0.0
    %683 = vmatpush1.msra.mxu0 0.0
    %684 = vmatprep.subr.mxu0 0.0
    %685 = vmatpush1.msra.mxu0 0.0
    %686 = vmatprep.subr.mxu0 0.0
    %687 = vmatpush1.msra.mxu0 0.0
    %688 = vmatprep.subr.mxu0 0.0
    %689 = vmatpush1.msra.mxu0 0.0
    %690 = vmatprep.subr.mxu0 0.0
    %691 = vmatpush1.msra.mxu0 0.0
    %692 = vmatprep.subr.mxu0 0.0
    %693 = vmatpush1.msra.mxu0 0.0
    %694 = vmatprep.subr.mxu0 0.0
    %695 = vmatpush1.msra.mxu0 0.0
    %696 = vmatprep.subr.mxu0 0.0
    %697 = vmatpush1.msra.mxu0 0.0
    %698 = vmatprep.subr.mxu0 0.0
    %699 = vmatpush1.msra.mxu0 0.0
    %700 = vmatprep.subr.mxu0 0.0
    %701 = vmatpush1.msra.mxu0 0.0
    %702 = vmatprep.subr.mxu0 0.0
    %703 = vmatpush1.msra.mxu0 0.0
    %704 = vmatprep.subr.mxu0 0.0
    %705 = vmatpush1.msra.mxu0 0.0
    %706 = vmatprep.subr.mxu0 0.0
    %707 = vmatpush1.msra.mxu0 0.0
    %708 = vmatprep.subr.mxu0 0.0
    %709 = vmatpush1.msra.mxu0 0.0
    %710 = vmatprep.subr.mxu0 0.0
    %711 = vmatpush1.msra.mxu0 0.0
    %712 = vmatprep.subr.mxu0 0.0
    %713 = vmatpush1.msra.mxu0 0.0
    %714 = vmatprep.subr.mxu0 0.0
    %715 = vmatpush1.msra.mxu0 0.0
    %716 = vmatprep.subr.mxu0 0.0
    %717 = vmatpush1.msra.mxu0 0.0
    %718 = vmatprep.subr.mxu0 0.0
    %719 = vmatpush1.msra.mxu0 0.0
    %720 = vmatprep.subr.mxu0 0.0
    %721 = vmatpush1.msra.mxu0 0.0
    %722 = vmatprep.subr.mxu0 0.0
    %723 = vmatpush1.msra.mxu0 0.0
    %724 = vmatprep.subr.mxu0 0.0
    %725 = vmatpush1.msra.mxu0 0.0
    %726 = vmatprep.subr.mxu0 0.0
    %727 = vmatpush1.msra.mxu0 0.0
    %728 = vmatprep.subr.mxu0 0.0
    %729 = vmatpush1.msra.mxu0 0.0
    %730 = vmatprep.subr.mxu0 0.0
    %731 = vmatpush1.msra.mxu0 0.0
    %732 = vmatprep.subr.mxu0 0.0
    %733 = vmatpush1.msra.mxu0 0.0
    %734 = vmatprep.subr.mxu0 0.0
    %735 = vmatpush1.msra.mxu0 0.0
    %736 = vmatprep.subr.mxu0 0.0
    %737 = vmatpush1.msra.mxu0 0.0
    %738 = vmatprep.mubr.f32.mxu0 0.0
    %739 = vmatmul.mubr.f32.gmra.mrb[0].mxu0 %v669
    %v740 = vpop.f32.mrb[0].mxu0
    %v741 = vadd.f32 0.0, %v740
    %v742 = vpop.f32.mrb[0].mxu0
    %743 = vmatprep.mubr.f32.mxu0 0.0
    %744 = vmatmul.mubr.f32.gmra.mrb[0].mxu0 %v672
    %v745 = vpop.f32.mrb[0].mxu0
    %v746 = vadd.f32 0.0, %v745
    %v747 = vpop.f32.mrb[0].mxu0
    %748 = vdwg.mxu0
    %vm749 = vcmask 64512
    %750 = vst.msk [vmem:[#allocation4] sm:$0xff] %vm749, %v741
    %751 = vst.msk [vmem:[#allocation4 + $0x8] sm:$0xff] %vm749, %v746
    %v752 = vld [vmem:[%s3] sm:$0xff]
    %v753 = vld [vmem:[%s3 + $0x8] sm:$0xff]
    %v754 = vld [vmem:[%s3 + $0x10] sm:$0xff]
    %v755 = vld [vmem:[%s3 + $0x18] sm:$0xff]
    %v756 = vlaneseq
    %v757 = vshrl.u32 %v756, 7
    %v758 = vsub.s32 1, %v757
    %v759 = vrot.slane %v28, %v758
    %v761 = vsel %vm39, %v563, 0
    %v764 = vsel %vm39, %v564, 0
    %766 = vmatprep.subr.mxu0 0.0
    %767 = vmatpush1.msra.mxu0 %v752
    %768 = vmatprep.subr.mxu0 0.0
    %769 = vmatpush1.msra.mxu0 %v753
    %770 = vmatprep.subr.mxu0 0.0
    %771 = vmatpush1.msra.mxu0 %v754
    %772 = vmatprep.subr.mxu0 0.0
    %773 = vmatpush1.msra.mxu0 %v755
    %774 = vmatprep.subr.mxu0 0.0
    %775 = vmatpush1.msra.mxu0 0.0
    %776 = vmatprep.subr.mxu0 0.0
    %777 = vmatpush1.msra.mxu0 0.0
    %778 = vmatprep.subr.mxu0 0.0
    %779 = vmatpush1.msra.mxu0 0.0
    %780 = vmatprep.subr.mxu0 0.0
    %781 = vmatpush1.msra.mxu0 0.0
    %782 = vmatprep.subr.mxu0 0.0
    %783 = vmatpush1.msra.mxu0 0.0
    %784 = vmatprep.subr.mxu0 0.0
    %785 = vmatpush1.msra.mxu0 0.0
    %786 = vmatprep.subr.mxu0 0.0
    %787 = vmatpush1.msra.mxu0 0.0
    %788 = vmatprep.subr.mxu0 0.0
    %789 = vmatpush1.msra.mxu0 0.0
    %790 = vmatprep.subr.mxu0 0.0
    %791 = vmatpush1.msra.mxu0 0.0
    %792 = vmatprep.subr.mxu0 0.0
    %793 = vmatpush1.msra.mxu0 0.0
    %794 = vmatprep.subr.mxu0 0.0
    %795 = vmatpush1.msra.mxu0 0.0
    %796 = vmatprep.subr.mxu0 0.0
    %797 = vmatpush1.msra.mxu0 0.0
    %798 = vmatprep.subr.mxu0 0.0
    %799 = vmatpush1.msra.mxu0 0.0
    %800 = vmatprep.subr.mxu0 0.0
    %801 = vmatpush1.msra.mxu0 0.0
    %802 = vmatprep.subr.mxu0 0.0
    %803 = vmatpush1.msra.mxu0 0.0
    %804 = vmatprep.subr.mxu0 0.0
    %805 = vmatpush1.msra.mxu0 0.0
    %806 = vmatprep.subr.mxu0 0.0
    %807 = vmatpush1.msra.mxu0 0.0
    %808 = vmatprep.subr.mxu0 0.0
    %809 = vmatpush1.msra.mxu0 0.0
    %810 = vmatprep.subr.mxu0 0.0
    %811 = vmatpush1.msra.mxu0 0.0
    %812 = vmatprep.subr.mxu0 0.0
    %813 = vmatpush1.msra.mxu0 0.0
    %814 = vmatprep.subr.mxu0 0.0
    %815 = vmatpush1.msra.mxu0 0.0
    %816 = vmatprep.subr.mxu0 0.0
    %817 = vmatpush1.msra.mxu0 0.0
    %818 = vmatprep.subr.mxu0 0.0
    %819 = vmatpush1.msra.mxu0 0.0
    %820 = vmatprep.subr.mxu0 0.0
    %821 = vmatpush1.msra.mxu0 0.0
    %822 = vmatprep.subr.mxu0 0.0
    %823 = vmatpush1.msra.mxu0 0.0
    %824 = vmatprep.subr.mxu0 0.0
    %825 = vmatpush1.msra.mxu0 0.0
    %826 = vmatprep.subr.mxu0 0.0
    %827 = vmatpush1.msra.mxu0 0.0
    %828 = vmatprep.subr.mxu0 0.0
    %829 = vmatpush1.msra.mxu0 0.0
    %830 = vmatprep.mubr.f32.mxu0 0.0
    %831 = vmatmul.mubr.f32.gmra.mrb[0].mxu0 %v761
    %v832 = vpop.f32.mrb[0].mxu0
    %v833 = vadd.f32 %v759, %v832
    %v834 = vpop.f32.mrb[0].mxu0
    %835 = vmatprep.mubr.f32.mxu0 0.0
    %836 = vmatmul.mubr.f32.gmra.mrb[0].mxu0 %v764
    %v837 = vpop.f32.mrb[0].mxu0
    %v838 = vadd.f32 %v759, %v837
    %v839 = vpop.f32.mrb[0].mxu0
    %840 = vdwg.mxu0
    %v841 = vadd.f32 %v24, %v833
    %v842 = vadd.f32 %v25, %v838
    %v843 = vsel %vm39, %v841, 0.0
    %844 = vadd.xlane.f32.xlu0 %v843
    %v845 = vpop.xlane.xlu0 %844
    %v846 = vsel %vm39, %v842, 0.0
    %847 = vadd.xlane.f32.xlu0 %v846
    %v848 = vpop.xlane.xlu0 %847
    %v849 = vrcp.pop 32.0
    %v850 = vmul.f32 %v845, %v849
    %v851 = vmul.f32 %v848, %v849
    %v852 = vsub.f32 %v841, %v850
    %v853 = vsub.f32 %v842, %v851
    %v854 = vmul.f32 %v852, %v852
    %v855 = vmul.f32 %v853, %v853
    %v856 = vsel %vm39, %v854, 0.0
    %857 = vadd.xlane.f32.xlu0 %v856
    %v858 = vpop.xlane.xlu0 %857
    %v859 = vsel %vm39, %v855, 0.0
    %860 = vadd.xlane.f32.xlu0 %v859
    %v861 = vpop.xlane.xlu0 %860
    %v862 = vmul.f32 %v858, %v849
    %v863 = vmul.f32 %v861, %v849
    %v864 = vadd.f32 %v862, 1e-05
    %v865 = vadd.f32 %v863, 1e-05
    %v866 = vrsqrt.pop %v864
    %v867 = vrsqrt.pop %v865
    %v868 = vmul.f32 %v852, %v866
    %v869 = vmul.f32 %v853, %v867
    %v870 = vlaneseq
    %v871 = vshrl.u32 %v870, 7
    %v872 = vsub.s32 2, %v871
    %v873 = vrot.slane %v28, %v872
    %v874 = vmul.f32 %v868, %v873
    %v875 = vmul.f32 %v869, %v873
    %v876 = vlaneseq
    %v877 = vshrl.u32 %v876, 7
    %v878 = vsub.s32 3, %v877
    %v879 = vrot.slane %v28, %v878
    %v880 = vadd.f32 %v874, %v879
    %v881 = vadd.f32 %v875, %v879
    %v882 = vld [vmem:[%s3 + $0x20] sm:$0xff]
    %v883 = vld [vmem:[%s3 + $0x28] sm:$0xff]
    %v884 = vld [vmem:[%s3 + $0x30] sm:$0xff]
    %v885 = vld [vmem:[%s3 + $0x38] sm:$0xff]
    %v886 = vld [vmem:[%s3 + $0x40] sm:$0xff]
    %v887 = vld [vmem:[%s3 + $0x48] sm:$0xff]
    %v888 = vld [vmem:[%s3 + $0x50] sm:$0xff]
    %v889 = vld [vmem:[%s3 + $0x58] sm:$0xff]
    %v890 = vld [vmem:[%s3 + $0x60] sm:$0xff]
    %v891 = vld [vmem:[%s3 + $0x68] sm:$0xff]
    %v892 = vld [vmem:[%s3 + $0x70] sm:$0xff]
    %v893 = vld [vmem:[%s3 + $0x78] sm:$0xff]
    %v894 = vlaneseq
    %v895 = vshrl.u32 %v894, 7
    %v896 = vsub.s32 4, %v895
    %v897 = vrot.slane %v28, %v896
    %v899 = vsel %vm39, %v880, 0
    %v902 = vsel %vm39, %v881, 0
    %904 = vmatprep.subr.mxu0 0.0
    %905 = vmatpush1.msra.mxu0 %v882
    %906 = vmatprep.subr.mxu0 0.0
    %907 = vmatpush1.msra.mxu0 %v883
    %908 = vmatprep.subr.mxu0 0.0
    %909 = vmatpush1.msra.mxu0 %v884
    %910 = vmatprep.subr.mxu0 0.0
    %911 = vmatpush1.msra.mxu0 %v885
    %912 = vmatprep.subr.mxu0 0.0
    %913 = vmatpush1.msra.mxu0 0.0
    %914 = vmatprep.subr.mxu0 0.0
    %915 = vmatpush1.msra.mxu0 0.0
    %916 = vmatprep.subr.mxu0 0.0
    %917 = vmatpush1.msra.mxu0 0.0
    %918 = vmatprep.subr.mxu0 0.0
    %919 = vmatpush1.msra.mxu0 0.0
    %920 = vmatprep.subr.mxu0 0.0
    %921 = vmatpush1.msra.mxu0 0.0
    %922 = vmatprep.subr.mxu0 0.0
    %923 = vmatpush1.msra.mxu0 0.0
    %924 = vmatprep.subr.mxu0 0.0
    %925 = vmatpush1.msra.mxu0 0.0
    %926 = vmatprep.subr.mxu0 0.0
    %927 = vmatpush1.msra.mxu0 0.0
    %928 = vmatprep.subr.mxu0 0.0
    %929 = vmatpush1.msra.mxu0 0.0
    %930 = vmatprep.subr.mxu0 0.0
    %931 = vmatpush1.msra.mxu0 0.0
    %932 = vmatprep.subr.mxu0 0.0
    %933 = vmatpush1.msra.mxu0 0.0
    %934 = vmatprep.subr.mxu0 0.0
    %935 = vmatpush1.msra.mxu0 0.0
    %936 = vmatprep.subr.mxu0 0.0
    %937 = vmatpush1.msra.mxu0 0.0
    %938 = vmatprep.subr.mxu0 0.0
    %939 = vmatpush1.msra.mxu0 0.0
    %940 = vmatprep.subr.mxu0 0.0
    %941 = vmatpush1.msra.mxu0 0.0
    %942 = vmatprep.subr.mxu0 0.0
    %943 = vmatpush1.msra.mxu0 0.0
    %944 = vmatprep.subr.mxu0 0.0
    %945 = vmatpush1.msra.mxu0 0.0
    %946 = vmatprep.subr.mxu0 0.0
    %947 = vmatpush1.msra.mxu0 0.0
    %948 = vmatprep.subr.mxu0 0.0
    %949 = vmatpush1.msra.mxu0 0.0
    %950 = vmatprep.subr.mxu0 0.0
    %951 = vmatpush1.msra.mxu0 0.0
    %952 = vmatprep.subr.mxu0 0.0
    %953 = vmatpush1.msra.mxu0 0.0
    %954 = vmatprep.subr.mxu0 0.0
    %955 = vmatpush1.msra.mxu0 0.0
    %956 = vmatprep.subr.mxu0 0.0
    %957 = vmatpush1.msra.mxu0 0.0
    %958 = vmatprep.subr.mxu0 0.0
    %959 = vmatpush1.msra.mxu0 0.0
    %960 = vmatprep.subr.mxu0 0.0
    %961 = vmatpush1.msra.mxu0 0.0
    %962 = vmatprep.subr.mxu0 0.0
    %963 = vmatpush1.msra.mxu0 0.0
    %964 = vmatprep.subr.mxu0 0.0
    %965 = vmatpush1.msra.mxu0 0.0
    %966 = vmatprep.subr.mxu0 0.0
    %967 = vmatpush1.msra.mxu0 0.0
    %968 = vmatprep.mubr.f32.mxu0 0.0
    %969 = vmatmul.mubr.f32.gmra.mrb[0].mxu0 %v899
    %v970 = vpop.f32.mrb[0].mxu0
    %v971 = vadd.f32 %v897, %v970
    %v972 = vpop.f32.mrb[0].mxu0
    %973 = vmatprep.mubr.f32.mxu0 0.0
    %974 = vmatmul.mubr.f32.gmra.mrb[0].mxu0 %v902
    %v975 = vpop.f32.mrb[0].mxu0
    %v976 = vadd.f32 %v897, %v975
    %v977 = vpop.f32.mrb[0].mxu0
    %978 = vdwg.mxu0
    %v979 = vmax.f32 %v971, 0.0
    %v980 = vmax.f32 %v976, 0.0
    %v981 = vlaneseq
    %v982 = vshrl.u32 %v981, 7
    %v983 = vsub.s32 5, %v982
    %v984 = vrot.slane %v28, %v983
    %v986 = vsel %vm586, %v979, 0
    %v989 = vsel %vm586, %v980, 0
    %991 = vmatprep.subr.mxu0 0.0
    %992 = vmatpush1.msra.mxu0 %v886
    %993 = vmatprep.subr.mxu0 0.0
    %994 = vmatpush1.msra.mxu0 %v887
    %995 = vmatprep.subr.mxu0 0.0
    %996 = vmatpush1.msra.mxu0 %v888
    %997 = vmatprep.subr.mxu0 0.0
    %998 = vmatpush1.msra.mxu0 %v889
    %999 = vmatprep.subr.mxu0 0.0
    %1000 = vmatpush1.msra.mxu0 %v890
    %1001 = vmatprep.subr.mxu0 0.0
    %1002 = vmatpush1.msra.mxu0 %v891
    %1003 = vmatprep.subr.mxu0 0.0
    %1004 = vmatpush1.msra.mxu0 %v892
    %1005 = vmatprep.subr.mxu0 0.0
    %1006 = vmatpush1.msra.mxu0 %v893
    %1007 = vmatprep.subr.mxu0 0.0
    %1008 = vmatpush1.msra.mxu0 0.0
    %1009 = vmatprep.subr.mxu0 0.0
    %1010 = vmatpush1.msra.mxu0 0.0
    %1011 = vmatprep.subr.mxu0 0.0
    %1012 = vmatpush1.msra.mxu0 0.0
    %1013 = vmatprep.subr.mxu0 0.0
    %1014 = vmatpush1.msra.mxu0 0.0
    %1015 = vmatprep.subr.mxu0 0.0
    %1016 = vmatpush1.msra.mxu0 0.0
    %1017 = vmatprep.subr.mxu0 0.0
    %1018 = vmatpush1.msra.mxu0 0.0
    %1019 = vmatprep.subr.mxu0 0.0
    %1020 = vmatpush1.msra.mxu0 0.0
    %1021 = vmatprep.subr.mxu0 0.0
    %1022 = vmatpush1.msra.mxu0 0.0
    %1023 = vmatprep.subr.mxu0 0.0
    %1024 = vmatpush1.msra.mxu0 0.0
    %1025 = vmatprep.subr.mxu0 0.0
    %1026 = vmatpush1.msra.mxu0 0.0
    %1027 = vmatprep.subr.mxu0 0.0
    %1028 = vmatpush1.msra.mxu0 0.0
    %1029 = vmatprep.subr.mxu0 0.0
    %1030 = vmatpush1.msra.mxu0 0.0
    %1031 = vmatprep.subr.mxu0 0.0
    %1032 = vmatpush1.msra.mxu0 0.0
    %1033 = vmatprep.subr.mxu0 0.0
    %1034 = vmatpush1.msra.mxu0 0.0
    %1035 = vmatprep.subr.mxu0 0.0
    %1036 = vmatpush1.msra.mxu0 0.0
    %1037 = vmatprep.subr.mxu0 0.0
    %1038 = vmatpush1.msra.mxu0 0.0
    %1039 = vmatprep.subr.mxu0 0.0
    %1040 = vmatpush1.msra.mxu0 0.0
    %1041 = vmatprep.subr.mxu0 0.0
    %1042 = vmatpush1.msra.mxu0 0.0
    %1043 = vmatprep.subr.mxu0 0.0
    %1044 = vmatpush1.msra.mxu0 0.0
    %1045 = vmatprep.subr.mxu0 0.0
    %1046 = vmatpush1.msra.mxu0 0.0
    %1047 = vmatprep.subr.mxu0 0.0
    %1048 = vmatpush1.msra.mxu0 0.0
    %1049 = vmatprep.subr.mxu0 0.0
    %1050 = vmatpush1.msra.mxu0 0.0
    %1051 = vmatprep.subr.mxu0 0.0
    %1052 = vmatpush1.msra.mxu0 0.0
    %1053 = vmatprep.subr.mxu0 0.0
    %1054 = vmatpush1.msra.mxu0 0.0
    %1055 = vmatprep.mubr.f32.mxu0 0.0
    %1056 = vmatmul.mubr.f32.gmra.mrb[0].mxu0 %v986
    %v1057 = vpop.f32.mrb[0].mxu0
    %v1058 = vadd.f32 %v984, %v1057
    %v1059 = vpop.f32.mrb[0].mxu0
    %1060 = vmatprep.mubr.f32.mxu0 0.0
    %1061 = vmatmul.mubr.f32.gmra.mrb[0].mxu0 %v989
    %v1062 = vpop.f32.mrb[0].mxu0
    %v1063 = vadd.f32 %v984, %v1062
    %v1064 = vpop.f32.mrb[0].mxu0
    %1065 = vdwg.mxu0
    %v1066 = vadd.f32 %v880, %v1058
    %v1067 = vadd.f32 %v881, %v1063
    %v1068 = vsel %vm39, %v1066, 0.0
    %1069 = vadd.xlane.f32.xlu0 %v1068
    %v1070 = vpop.xlane.xlu0 %1069
    %v1071 = vsel %vm39, %v1067, 0.0
    %1072 = vadd.xlane.f32.xlu0 %v1071
    %v1073 = vpop.xlane.xlu0 %1072
    %v1074 = vmul.f32 %v1070, %v849
    %v1075 = vmul.f32 %v1073, %v849
    %v1076 = vsub.f32 %v1066, %v1074
    %v1077 = vsub.f32 %v1067, %v1075
    %v1078 = vmul.f32 %v1076, %v1076
    %v1079 = vmul.f32 %v1077, %v1077
    %v1080 = vsel %vm39, %v1078, 0.0
    %1081 = vadd.xlane.f32.xlu0 %v1080
    %v1082 = vpop.xlane.xlu0 %1081
    %v1083 = vsel %vm39, %v1079, 0.0
    %1084 = vadd.xlane.f32.xlu0 %v1083
    %v1085 = vpop.xlane.xlu0 %1084
    %v1086 = vmul.f32 %v1082, %v849
    %v1087 = vmul.f32 %v1085, %v849
    %v1088 = vadd.f32 %v1086, 1e-05
    %v1089 = vadd.f32 %v1087, 1e-05
    %v1090 = vrsqrt.pop %v1088
    %v1091 = vrsqrt.pop %v1089
    %v1092 = vmul.f32 %v1076, %v1090
    %v1093 = vmul.f32 %v1077, %v1091
    %v1094 = vlaneseq
    %v1095 = vshrl.u32 %v1094, 7
    %v1096 = vsub.s32 6, %v1095
    %v1097 = vrot.slane %v28, %v1096
    %v1098 = vmul.f32 %v1092, %v1097
    %v1099 = vmul.f32 %v1093, %v1097
    %v1100 = vlaneseq
    %v1101 = vshrl.u32 %v1100, 7
    %v1102 = vsub.s32 7, %v1101
    %v1103 = vrot.slane %v28, %v1102
    %v1104 = vadd.f32 %v1098, %v1103
    %v1105 = vadd.f32 %v1099, %v1103
    %1106 = vst.msk [vmem:[#allocation2] sm:$0xff] %vm39, %v1104
    %1107 = vst.msk [vmem:[#allocation2 + $0x8] sm:$0xff] %vm39, %v1105
    // Predicated region
    $region22: #{transformer_encoder_layer_forward.1} parent=1 // pred_check
      _
    $region23: #{transformer_encoder_layer_forward.1} parent=1 // pred_check_branch
      %1109 = sbr.rel (0) target = $region25
    $region24: #{transformer_encoder_layer_forward.1} parent=1 // pred_region
      %s1111 = ssub.s32 256, 256
      %1112 = vsyncadd [#allocation3], %s1111
      %s1113 = sshll.u32 [#allocation2], 4
      %s1114 = int_to_ptr.vmem [resolvable:$true] %s1113
      %1119 = dma.vmem_to_hbm [thread:$0]  %s1114, 256, %s5, [#allocation3], 128, 128, 8
    $region25: #{transformer_encoder_layer_forward.1} parent=1 // pred_fallthru
      _
    // Predicated region
    $region26: #{transformer_encoder_layer_forward.1} parent=1 // pred_check
      _
    $region27: #{transformer_encoder_layer_forward.1} parent=1 // pred_check_branch
      %1121 = sbr.rel (0) target = $region29
    $region28: #{transformer_encoder_layer_forward.1} parent=1 // pred_region
      %s1123 = ssub.s32 256, 256
      %1124 = vsyncadd [#allocation5], %s1123
      %s1125 = sshll.u32 [#allocation4], 4
      %s1126 = int_to_ptr.vmem [resolvable:$true] %s1125
      %1131 = dma.vmem_to_hbm [thread:$0]  %s1126, 256, %s6, [#allocation5], 128, 128, 8
    $region29: #{transformer_encoder_layer_forward.1} parent=1 // pred_fallthru
      _
    // Predicated region
    $region30: #{transformer_encoder_layer_forward.1} parent=1 // pred_check
      _
    $region31: #{transformer_encoder_layer_forward.1} parent=1 // pred_check_branch
      %1133 = sbr.rel (0) target = $region33
    $region32: #{transformer_encoder_layer_forward.1} parent=1 // pred_region
      %1134 = dma.done [#allocation3], 256
    $region33: #{transformer_encoder_layer_forward.1} parent=1 // pred_fallthru
      _
    // Predicated region
    $region34: #{transformer_encoder_layer_forward.1} parent=1 // pred_check
      _
    $region35: #{transformer_encoder_layer_forward.1} parent=1 // pred_check_branch
      %1136 = sbr.rel (0) target = $region37
    $region36: #{transformer_encoder_layer_forward.1} parent=1 // pred_region
      %1137 = dma.done [#allocation5], 256
    $region37: #{transformer_encoder_layer_forward.1} parent=1 // pred_fallthru
      _
    %1138 = vsyncpa [#allocation3], 1
    %1139 = vsyncpa [#allocation5], 1

</llo_original>
